<compile_context>
chip_gen: v5e
topology: v5e:2x2
jax: 0.10.0
libtpu: 0.0.40
codegen_flags: <defaults>
</compile_context>

<pallas_src>
import functools

import jax
import jax.numpy as jnp
from jax.experimental import pallas as pl
from jax.experimental.pallas import tpu as pltpu

EPS = 1e-5
LANES = 128
VMEM_LIMIT = 32 * 1024 * 1024  # explicit scoped-VMEM budget (safe on v5e/v6e/v7x)


def _round_up(x, m):
    return -(-x // m) * m


def _pick_tile(dim, candidates):
    for c in candidates:
        if dim % c == 0:
            return c
    return dim


# ----------------------------------------------------------------------------
# Pallas kernels
# ----------------------------------------------------------------------------
def _matmul_bn_kernel(a_ref, b_ref, s_ref, t_ref, o_ref, acc_ref, *, relu):
    """Tiled bf16 matmul, f32 accumulate; epilogue: y = acc*scale + shift (+ReLU)."""
    @pl.when(pl.program_id(2) == 0)
    def _():
        acc_ref[...] = jnp.zeros_like(acc_ref)

    acc_ref[...] += jnp.dot(a_ref[...], b_ref[...],
                            preferred_element_type=jnp.float32)

    @pl.when(pl.program_id(2) == pl.num_programs(2) - 1)
    def _():
        y = acc_ref[...] * s_ref[...] + t_ref[...]
        if relu:
            y = jnp.maximum(y, 0.0)
        o_ref[...] = y.astype(o_ref.dtype)


def _matmul_bn_add_relu_kernel(a_ref, b_ref, s_ref, t_ref, r_ref, o_ref, acc_ref):
    """Tiled matmul; epilogue: ReLU(acc*scale + shift + residual)."""
    @pl.when(pl.program_id(2) == 0)
    def _():
        acc_ref[...] = jnp.zeros_like(acc_ref)

    acc_ref[...] += jnp.dot(a_ref[...], b_ref[...],
                            preferred_element_type=jnp.float32)

    @pl.when(pl.program_id(2) == pl.num_programs(2) - 1)
    def _():
        y = acc_ref[...] * s_ref[...] + t_ref[...] + r_ref[...].astype(jnp.float32)
        o_ref[...] = jnp.maximum(y, 0.0).astype(o_ref.dtype)


def _max9_kernel(t0, t1, t2, t3, t4, t5, t6, t7, t8, o_ref):
    """Elementwise max over 9 lane-dense (rows, 128) tap views."""
    m = jnp.maximum(t0[...], t1[...])
    m = jnp.maximum(m, t2[...])
    m = jnp.maximum(m, t3[...])
    m = jnp.maximum(m, t4[...])
    m = jnp.maximum(m, t5[...])
    m = jnp.maximum(m, t6[...])
    m = jnp.maximum(m, t7[...])
    m = jnp.maximum(m, t8[...])
    o_ref[...] = m


def _avgpool_fc_kernel(x_ref, w_ref, b_ref, o_ref):
    """Global average pool over the spatial axis fused with the tiny FC head."""
    feat = jnp.mean(x_ref[...].astype(jnp.float32), axis=1)          # (N, C)
    o_ref[...] = (jnp.dot(feat, w_ref[...],
                          preferred_element_type=jnp.float32) + b_ref[...])


# ----------------------------------------------------------------------------
# Pallas wrappers
# ----------------------------------------------------------------------------
def _fused_matmul(a, w, scale, shift, *, residual=None, relu=True,
                  out_dtype=jnp.bfloat16):
    """(M, K) @ (Kp, Np) with fused BN(+residual)(+ReLU) epilogue.

    `w`, `scale`, `shift` are pre-padded at init to (Kp, Np) / (1, Np).
    Returns the padded (Mp, Np) output; caller slices the valid region.
    """
    M, K = a.shape
    Kp, Np = w.shape

    if M >= LANES:
        tm = LANES
        Mp = _round_up(M, tm)
    else:
        tm = _round_up(M, 8)
        Mp = tm
    tn = _pick_tile(Np, (256, 128))
    tk = _pick_tile(Kp, (512, 256, 128))

    a_p = jnp.pad(a, ((0, Mp - M), (0, Kp - K))).astype(jnp.bfloat16)

    in_specs = [
        pl.BlockSpec((tm, tk), lambda i, j, k: (i, k)),
        pl.BlockSpec((tk, tn), lambda i, j, k: (k, j)),
        pl.BlockSpec((1, tn), lambda i, j, k: (0, j)),
        pl.BlockSpec((1, tn), lambda i, j, k: (0, j)),
    ]
    args = [a_p, w, scale, shift]

    if residual is not None:
        r_p = jnp.pad(residual,
                      ((0, Mp - M), (0, Np - residual.shape[1]))
                      ).astype(jnp.bfloat16)
        in_specs.append(pl.BlockSpec((tm, tn), lambda i, j, k: (i, j)))
        args.append(r_p)
        kernel = _matmul_bn_add_relu_kernel
    else:
        kernel = functools.partial(_matmul_bn_kernel, relu=relu)

    out = pl.pallas_call(
        kernel,
        out_shape=jax.ShapeDtypeStruct((Mp, Np), out_dtype),
        grid_spec=pltpu.PrefetchScalarGridSpec(
            num_scalar_prefetch=0,
            grid=(Mp // tm, Np // tn, Kp // tk),
            in_specs=in_specs,
            out_specs=pl.BlockSpec((tm, tn), lambda i, j, k: (i, j)),
            scratch_shapes=[pltpu.VMEM((tm, tn), jnp.float32)],
        ),
        compiler_params=pltpu.CompilerParams(
            dimension_semantics=("parallel", "parallel", "arbitrary"),
            vmem_limit_bytes=VMEM_LIMIT),
    )(*args)
    return out


# ----------------------------------------------------------------------------
# Layer ops (JAX glue around the Pallas kernels)
# ----------------------------------------------------------------------------
def _im2col(x_nhwc, kh, kw, stride, pad):
    N, H, W, Cin = x_nhwc.shape
    xp = jnp.pad(x_nhwc, ((0, 0), (pad, pad), (pad, pad), (0, 0)))
    Hp, Wp = H + 2 * pad, W + 2 * pad
    Ho = (Hp - kh) // stride + 1
    Wo = (Wp - kw) // stride + 1
    cols = []
    for di in range(kh):
        for dj in range(kw):
            cols.append(
                xp[:, di:di + stride * (Ho - 1) + 1:stride,
                   dj:dj + stride * (Wo - 1) + 1:stride, :])
    pat = jnp.concatenate(cols, axis=-1)               # (N, Ho, Wo, kh*kw*Cin)
    return pat.reshape(N * Ho * Wo, kh * kw * Cin), Ho, Wo


def conv_bn(x, lp, *, relu=True, residual=None):
    """Conv2d(bias=False) + folded BN (+residual add) (+ReLU), one Pallas call."""
    N = x.shape[0]
    a, Ho, Wo = _im2col(x, lp["kh"], lp["kw"], lp["stride"], lp["pad"])
    M = N * Ho * Wo
    res2d = None
    if residual is not None:
        res2d = residual.reshape(M, residual.shape[-1])
    out = _fused_matmul(a, lp["w"], lp["scale"], lp["shift"],
                        residual=res2d, relu=relu)
    cout = lp["cout"]
    return out[:M, :cout].reshape(N, Ho, Wo, cout)


def maxpool_3x3_s2(x):
    """MaxPool2d(kernel=3, stride=2, padding=1) via a lane-dense 9-tap max kernel."""
    N, H, W, C = x.shape
    xp = jnp.pad(x, ((0, 0), (1, 1), (1, 1), (0, 0)),
                 constant_values=-jnp.inf)
    Ho = (H + 2 - 3) // 2 + 1
    Wo = (W + 2 - 3) // 2 + 1

    E = N * Ho * Wo * C
    rows = _round_up(pl.cdiv(E, LANES), 8)
    tile = min(512, rows)
    rows_p = _round_up(rows, tile)
    pad_e = rows_p * LANES - E

    taps2d = []
    for di in range(3):
        for dj in range(3):
            t = xp[:, di:di + 2 * (Ho - 1) + 1:2,
                   dj:dj + 2 * (Wo - 1) + 1:2, :].reshape(-1)
            if pad_e:
                t = jnp.pad(t, (0, pad_e))
            taps2d.append(t.reshape(rows_p, LANES))

    out = pl.pallas_call(
        _max9_kernel,
        out_shape=jax.ShapeDtypeStruct((rows_p, LANES), x.dtype),
        grid=(rows_p // tile,),
        in_specs=[pl.BlockSpec((tile, LANES), lambda i: (i, 0))] * 9,
        out_specs=pl.BlockSpec((tile, LANES), lambda i: (i, 0)),
        compiler_params=pltpu.CompilerParams(
            dimension_semantics=("parallel",),
            vmem_limit_bytes=VMEM_LIMIT),
    )(*taps2d)
    return out.reshape(-1)[:E].reshape(N, Ho, Wo, C)


def avgpool_fc(x, fc):
    """Global average pool + Linear(512, 2) fused in one small kernel."""
    N, H, W, C = x.shape
    xr = x.reshape(N, H * W, C)
    ncp = fc["w"].shape[1]
    out = pl.pallas_call(
        _avgpool_fc_kernel,
        out_shape=jax.ShapeDtypeStruct((N, ncp), jnp.float32),
        grid=(1,),
        in_specs=[
            pl.BlockSpec((N, H * W, C), lambda i: (0, 0, 0)),
            pl.BlockSpec(fc["w"].shape, lambda i: (0, 0)),
            pl.BlockSpec(fc["b"].shape, lambda i: (0, 0)),
        ],
        out_specs=pl.BlockSpec((N, ncp), lambda i: (0, 0)),
        compiler_params=pltpu.CompilerParams(vmem_limit_bytes=VMEM_LIMIT),
    )(xr, fc["w"], fc["b"])
    return out[:, :fc["ncls"]]


def basic_block(x, bp):
    out = conv_bn(x, bp["c1"], relu=True)
    if "down" in bp:
        identity = conv_bn(x, bp["down"], relu=False)
    else:
        identity = x
    return conv_bn(out, bp["c2"], residual=identity)


def resnet18_forward(params, x_nchw):
    x = jnp.transpose(x_nchw, (0, 2, 3, 1)).astype(jnp.bfloat16)   # NCHW->NHWC
    x = conv_bn(x, params["conv1"], relu=True)
    x = maxpool_3x3_s2(x)
    for lname in ("layer1", "layer2", "layer3", "layer4"):
        for bp in params[lname]:
            x = basic_block(x, bp)
    return avgpool_fc(x, params["fc"])                              # (N, 2) f32


# ----------------------------------------------------------------------------
# Deterministic parameter init + one-time folding into the kernel layout
# ----------------------------------------------------------------------------
def _fold_conv_bn(conv_w, bn, stride, pad):
    """OIHW conv weight + BN stats -> padded bf16 (Kp, Np) matrix and f32 affine."""
    cout, cin, kh, kw = conv_w.shape
    K = kh * kw * cin
    Kp = _round_up(K, 128)
    Np = _round_up(cout, 128)
    wmat = jnp.transpose(conv_w, (2, 3, 1, 0)).reshape(K, cout)
    wmat = jnp.pad(wmat, ((0, Kp - K), (0, Np - cout))).astype(jnp.bfloat16)
    scale = bn["gamma"] / jnp.sqrt(bn["var"] + EPS)
    shift = bn["beta"] - bn["mean"] * scale
    scale = jnp.pad(scale, (0, Np - cout)).reshape(1, Np).astype(jnp.float32)
    shift = jnp.pad(shift, (0, Np - cout)).reshape(1, Np).astype(jnp.float32)
    return dict(w=wmat, scale=scale, shift=shift,
                kh=kh, kw=kw, stride=stride, pad=pad, cout=cout)


def init_params(key):
    keys = iter(jax.random.split(key, 64))

    def conv_w(cout, cin, k):
        fan_in = float(cin * k * k)
        return (jax.random.normal(next(keys), (cout, cin, k, k), jnp.float32)
                * (1.0 / fan_in ** 0.5))

    def bn_p(c):
        return dict(gamma=jnp.ones((c,), jnp.float32),
                    beta=jnp.zeros((c,), jnp.float32),
                    mean=jnp.zeros((c,), jnp.float32),
                    var=jnp.ones((c,), jnp.float32))

    params = dict(conv1=_fold_conv_bn(conv_w(64, 3, 7), bn_p(64), 2, 3))
    cin = 64
    for lname, cout, stride in (("layer1", 64, 1), ("layer2", 128, 2),
                                ("layer3", 256, 2), ("layer4", 512, 2)):
        blocks = []
        for b in range(2):
            s = stride if b == 0 else 1
            bp = dict(
                c1=_fold_conv_bn(conv_w(cout, cin, 3), bn_p(cout), s, 1),
                c2=_fold_conv_bn(conv_w(cout, cout, 3), bn_p(cout), 1, 1),
            )
            if s != 1 or cin != cout:
                bp["down"] = _fold_conv_bn(conv_w(cout, cin, 1), bn_p(cout), s, 0)
            blocks.append(bp)
            cin = cout
        params[lname] = blocks

    ncls = 2
    ncp = _round_up(ncls, 128)
    fc_w = (jax.random.normal(next(keys), (ncls, 512), jnp.float32)
            * (1.0 / 512.0 ** 0.5))
    fc_b = jnp.zeros((ncls,), jnp.float32)
    params["fc"] = dict(
        w=jnp.pad(fc_w.T, ((0, 0), (0, ncp - ncls))).astype(jnp.float32),
        b=jnp.pad(fc_b, (0, ncp - ncls)).reshape(1, ncp).astype(jnp.float32),
        ncls=ncls)
    return params


if __name__ == "__main__":
    key = jax.random.PRNGKey(0)
    pkey, xkey = jax.random.split(key)
    params = init_params(pkey)
    # Small input consistent with the module: NCHW, 3 channels, 32x32 spatial.
    x = jax.random.normal(xkey, (2, 3, 32, 32), jnp.float32)
    logits = resnet18_forward(params, x)
    jax.block_until_ready(logits)
    assert logits.shape == (2, 2) and logits.dtype == jnp.float32
    print("KERNEL_OK")
</pallas_src>

<mosaic_0001>
module attributes {stable_mosaic.version = 11 : i64} {
  func.func @_matmul_bn_kernel(%arg0: i32, %arg1: i32, %arg2: i32, %arg3: memref<128x256xbf16, #tpu.memory_space<vmem>>, %arg4: memref<256x128xbf16, #tpu.memory_space<vmem>>, %arg5: memref<1x128xf32, #tpu.memory_space<vmem>>, %arg6: memref<1x128xf32, #tpu.memory_space<vmem>>, %arg7: memref<128x128xbf16, #tpu.memory_space<vmem>>, %arg8: memref<128x128xf32, #tpu.memory_space<vmem>>) attributes {dimension_semantics = [#tpu.dimension_semantics<parallel>, #tpu.dimension_semantics<parallel>, #tpu.dimension_semantics<arbitrary>], iteration_bounds = array<i64: 4, 1, 1>, scalar_prefetch = 0 : i64, scratch_operands = 1 : i64, tpu.core_type = #tpu.core_type<tc>, window_params = [{transform_indices = @transform_0, window_bounds = array<i64: 128, 256>}, {transform_indices = @transform_1, window_bounds = array<i64: 256, 128>}, {transform_indices = @transform_2, window_bounds = array<i64: 1, 128>}, {transform_indices = @transform_3, window_bounds = array<i64: 1, 128>}, {transform_indices = @transform_4, window_bounds = array<i64: 128, 128>}]} {
    %c0_i32 = arith.constant 0 : i32
    %0 = arith.cmpi eq, %arg2, %c0_i32 : i32
    %1 = arith.extui %0 : i1 to i32
    %c0_i32_0 = arith.constant 0 : i32
    %2 = arith.cmpi ne, %1, %c0_i32_0 : i32
    scf.if %2 {
      %cst_10 = arith.constant 0.000000e+00 : f32
      %12 = vector.broadcast %cst_10 : f32 to vector<128x128xf32>
      %c0_11 = arith.constant 0 : index
      %c0_12 = arith.constant 0 : index
      %13 = vector.load %arg8[%c0_11, %c0_12] : memref<128x128xf32, #tpu.memory_space<vmem>>, vector<128x128xf32>
      tpu.vector_store %arg8[%c0_11, %c0_12], %12 {strides = array<i32>} : memref<128x128xf32, #tpu.memory_space<vmem>>, vector<128x128xf32>,
    } else {
    }
    %c0 = arith.constant 0 : index
    %c0_1 = arith.constant 0 : index
    %3 = vector.load %arg8[%c0, %c0_1] : memref<128x128xf32, #tpu.memory_space<vmem>>, vector<128x128xf32>
    %c0_2 = arith.constant 0 : index
    %c0_3 = arith.constant 0 : index
    %4 = vector.load %arg3[%c0_2, %c0_3] : memref<128x256xbf16, #tpu.memory_space<vmem>>, vector<128x256xbf16>
    %c0_4 = arith.constant 0 : index
    %c0_5 = arith.constant 0 : index
    %5 = vector.load %arg4[%c0_4, %c0_5] : memref<256x128xbf16, #tpu.memory_space<vmem>>, vector<256x128xbf16>
    %cst = arith.constant dense<0.000000e+00> : vector<128x128xf32>
    %6 = tpu.matmul %4, %5, %cst {dimension_numbers = #tpu.dot_dimension_numbers<[1], [0], [0], [1], [0, 0, 1, 1], [], []>} : vector<128x256xbf16>, vector<256x128xbf16>, vector<128x128xf32> -> vector<128x128xf32>
    %7 = arith.addf %3, %6 : vector<128x128xf32>
    %c0_6 = arith.constant 0 : index
    %c0_7 = arith.constant 0 : index
    %8 = vector.load %arg8[%c0_6, %c0_7] : memref<128x128xf32, #tpu.memory_space<vmem>>, vector<128x128xf32>
    tpu.vector_store %arg8[%c0_6, %c0_7], %7 {strides = array<i32>} : memref<128x128xf32, #tpu.memory_space<vmem>>, vector<128x128xf32>,
    %c0_i32_8 = arith.constant 0 : i32
    %9 = arith.cmpi eq, %arg2, %c0_i32_8 : i32
    %10 = arith.extui %9 : i1 to i32
    %c0_i32_9 = arith.constant 0 : i32
    %11 = arith.cmpi ne, %10, %c0_i32_9 : i32
    scf.if %11 {
      %c0_10 = arith.constant 0 : index
      %c0_11 = arith.constant 0 : index
      %12 = vector.load %arg8[%c0_10, %c0_11] : memref<128x128xf32, #tpu.memory_space<vmem>>, vector<128x128xf32>
      %c0_12 = arith.constant 0 : index
      %c0_13 = arith.constant 0 : index
      %13 = vector.load %arg5[%c0_12, %c0_13] : memref<1x128xf32, #tpu.memory_space<vmem>>, vector<1x128xf32>
      %14 = vector.broadcast %13 : vector<1x128xf32> to vector<128x128xf32>
      %15 = arith.mulf %12, %14 : vector<128x128xf32>
      %c0_14 = arith.constant 0 : index
      %c0_15 = arith.constant 0 : index
      %16 = vector.load %arg6[%c0_14, %c0_15] : memref<1x128xf32, #tpu.memory_space<vmem>>, vector<1x128xf32>
      %17 = vector.broadcast %16 : vector<1x128xf32> to vector<128x128xf32>
      %18 = arith.addf %15, %17 : vector<128x128xf32>
      %cst_16 = arith.constant 0.000000e+00 : f32
      %19 = vector.broadcast %cst_16 : f32 to vector<128x128xf32>
      %20 = arith.maximumf %18, %19 : vector<128x128xf32>
      %21 = arith.truncf %20 : vector<128x128xf32> to vector<128x128xbf16>
      %c0_17 = arith.constant 0 : index
      %c0_18 = arith.constant 0 : index
      %22 = vector.load %arg7[%c0_17, %c0_18] : memref<128x128xbf16, #tpu.memory_space<vmem>>, vector<128x128xbf16>
      tpu.vector_store %arg7[%c0_17, %c0_18], %21 {strides = array<i32>} : memref<128x128xbf16, #tpu.memory_space<vmem>>, vector<128x128xbf16>,
    } else {
    }
    return
  }
  func.func @transform_0(%arg0: i32, %arg1: i32, %arg2: i32) -> (i32, i32) {
    %c0_i32 = arith.constant 0 : i32
    return %arg0, %arg2 : i32, i32
  }
  func.func @transform_1(%arg0: i32, %arg1: i32, %arg2: i32) -> (i32, i32) {
    %c0_i32 = arith.constant 0 : i32
    return %arg2, %arg1 : i32, i32
  }
  func.func @transform_2(%arg0: i32, %arg1: i32, %arg2: i32) -> (i32, i32) {
    %c0_i32 = arith.constant 0 : i32
    %c0_i32_0 = arith.constant 0 : i32
    return %c0_i32, %arg1 : i32, i32
  }
  func.func @transform_3(%arg0: i32, %arg1: i32, %arg2: i32) -> (i32, i32) {
    %c0_i32 = arith.constant 0 : i32
    %c0_i32_0 = arith.constant 0 : i32
    return %c0_i32, %arg1 : i32, i32
  }
  func.func @transform_4(%arg0: i32, %arg1: i32, %arg2: i32) -> (i32, i32) {
    %c0_i32 = arith.constant 0 : i32
    return %arg0, %arg1 : i32, i32
  }
}

</mosaic_0001>

<llo_original>
// kernel: tpu_custom_call.1
$region0: #{tpu_custom_call.1}
  #allocation0 [shape = 'u32[]', space=smem, size = 0x4, offset = 0x4, fixed_abs, tag = 'smem constant byte address 0x4 - core index']
  #allocation1 [shape = 'u32[72,128]{1,0:T(1,128)}', space=vmem, size = 0x9000, scoped, tag = 'internal scratch']
  #allocation2 [shape = 'f32[128,128]{1,0:T(8,128)}', space=vmem, size = 0x10000, scoped, tag = 'scratch operand']
  %s0 = inlined_call_operand.hbm [shape: bf16[512,256], index: 0, kind: input, shape index: {}]
  %s1 = inlined_call_operand.hbm [shape: bf16[256,128], index: 1, kind: input, shape index: {}]
  %s2 = inlined_call_operand.vmem [shape: f32[1,128], index: 2, kind: input, shape index: {}]
  %s3 = inlined_call_operand.vmem [shape: f32[1,128], index: 3, kind: input, shape index: {}]
  %s4 = inlined_call_operand.hbm [shape: bf16[512,128], index: 4, kind: output, shape index: {}]
  %s5 = sld [smem:[#allocation0]]
  $region65: #{tpu_custom_call.1} parent=0
    _
  %s7 = ssub.s32 1, %s5
  %s8 = scalar_select 0, %s7, %s5
  $region1: #{tpu_custom_call.1} parent=0
    #allocation3 [shape = 'u8[131072]{0}', space=vmem, size = 0x20000, scoped, tag = 'input window, operand 0']
    #allocation4 [shape = 's32[2]{0}', space=sflag, size = 0x8, scoped, tag = 'scoped memory for tpu_custom_call.1']
    #allocation5 [shape = 's32[2]{0}', space=sflag, size = 0x8, scoped, tag = 'scoped memory for tpu_custom_call.1']
    #allocation6 [shape = 'u8[65536]{0}', space=vmem, size = 0x10000, scoped, tag = 'input window, operand 1, single buffered']
    #allocation7 [shape = 's32[1]{0}', space=sflag, size = 0x4, scoped, tag = 'scoped memory for tpu_custom_call.1']
    #allocation8 [shape = 'u8[65536]{0}', space=vmem, size = 0x10000, scoped, tag = 'output window, operand 0']
    %9 = vsyncpa [#allocation4], 0
    %s10 = scalar_lea.sflag [#allocation4], 1
    %11 = vsyncpa %s10, 0
    %12 = vsyncpa [#allocation7], 0
    %13 = vsyncpa [#allocation5], 0
    %s14 = scalar_lea.sflag [#allocation5], 1
    %15 = vsyncpa %s14, 0
    loop: start=0, step=1, limit=6
    $region2: #{tpu_custom_call.1} parent=1 // loop_pre_header
      _
    $region3: #{tpu_custom_call.1} parent=1 // loop_header
      %s17 = sphi 0, %s21
      %p18 = scmp.ge.s32.totalorder %s17, 6
      %s24 = sphi 0, %s43
      %s25 = sphi 0, %s39
      %s26 = sphi 0, %s35
      %s27 = sphi 0, %s24
      %s28 = sphi 0, %s25
      %s29 = sphi 0, %s26
      %s30 = sphi 0, %s27
      %s31 = sphi 0, %s28
      %s32 = sphi 0, %s29
      %s48 = sphi 0, %s50
      %s51 = sphi 0, %s48
      %s52 = sphi 0, %s51
      %s68 = sphi 0, %s52
      %s76 = sphi 0, %s78
      %s79 = sphi 0, %s76
      %s80 = sphi 0, %s79
      %s96 = sphi 0, %s80
      %s102 = sphi 0, %s104
      %s105 = sphi 0, %s102
      %s106 = sphi 0, %s105
      %s122 = sphi 0, %s106
      %s128 = sphi 0, %s130
      %s131 = sphi 0, %s128
      %s132 = sphi 0, %s131
      %s148 = sphi 0, %s132
      %s156 = sphi 0, %s158
      %s159 = sphi 0, %s156
      %s160 = sphi 0, %s159
      %s176 = sphi 0, %s160
    $region4: #{tpu_custom_call.1} parent=1 // loop_header_branch
      %20 = sbr.rel (%p18) target = $region8
    $region5: #{tpu_custom_call.1} parent=1 // loop_body
      %s22 = ssub.s32 %s17, 1
      %s23 = ssub.s32 %s17, 2
      %s33 = sadd.s32 1, %s26
      %p34 = scmp.ge.s32.totalorder %s33, 1
      %s35 = scalar_select %p34, 0, %s33
      %s36 = sadd.s32 1, %s25
      %s37 = scalar_select %p34, %s36, %s25
      %p38 = scmp.ge.s32.totalorder %s37, 1
      %s39 = scalar_select %p38, 0, %s37
      %s40 = sadd.s32 1, %s24
      %s41 = scalar_select %p38, %s40, %s24
      %p42 = scmp.ge.s32.totalorder %s41, 4
      %s43 = scalar_select %p42, 0, %s41
      %s44 = ssub.s32 %s24, %s43
      %s45 = ssub.s32 %s26, %s35
      %s46 = sor.u32 %s44, %s45
      %p47 = scmp.eq.s32.totalorder %s46, 0
      %s49 = sadd.s32 %s48, 1
      %s50 = scalar_select %p47, %s48, %s49
      %p53 = pneg %p47
      %p54 = scmp.eq.s32.totalorder %s17, 3
      %p55 = por %p53, %p54
      %p56 = scmp.ne.s32.totalorder %s48, %s51
      %p57 = scmp.eq.s32.totalorder %s17, 0
      %p58 = por %p56, %p57
      %p59 = scmp.ne.s32.totalorder %s48, %s51
      %p60 = scmp.eq.s32.totalorder %s22, 3
      %p61 = por %p59, %p60
      %p62 = scmp.ne.s32.totalorder %s51, %s52
      %p63 = scmp.eq.s32.totalorder %s22, 0
      %p64 = por %p62, %p63
      %p65 = scmp.ne.s32.totalorder %s51, %s52
      %p66 = scmp.eq.s32.totalorder %s23, 3
      %p67 = por %p65, %p66
      %p69 = scmp.ne.s32.totalorder %s52, %s68
      %p70 = scmp.eq.s32.totalorder %s23, 0
      %p71 = por %p69, %p70
      %s72 = ssub.s32 %s26, %s35
      %s73 = ssub.s32 %s25, %s39
      %s74 = sor.u32 %s72, %s73
      %p75 = scmp.eq.s32.totalorder %s74, 0
      %s77 = sadd.s32 %s76, 1
      %s78 = scalar_select %p75, %s76, %s77
      %p81 = pneg %p75
      %p82 = scmp.eq.s32.totalorder %s17, 3
      %p83 = por %p81, %p82
      %p84 = scmp.ne.s32.totalorder %s76, %s79
      %p85 = scmp.eq.s32.totalorder %s17, 0
      %p86 = por %p84, %p85
      %p87 = scmp.ne.s32.totalorder %s76, %s79
      %p88 = scmp.eq.s32.totalorder %s22, 3
      %p89 = por %p87, %p88
      %p90 = scmp.ne.s32.totalorder %s79, %s80
      %p91 = scmp.eq.s32.totalorder %s22, 0
      %p92 = por %p90, %p91
      %p93 = scmp.ne.s32.totalorder %s79, %s80
      %p94 = scmp.eq.s32.totalorder %s23, 3
      %p95 = por %p93, %p94
      %p97 = scmp.ne.s32.totalorder %s80, %s96
      %p98 = scmp.eq.s32.totalorder %s23, 0
      %p99 = por %p97, %p98
      %s100 = ssub.s32 %s25, %s39
      %p101 = scmp.eq.s32.totalorder %s100, 0
      %s103 = sadd.s32 %s102, 1
      %s104 = scalar_select %p101, %s102, %s103
      %p107 = pneg %p101
      %p108 = scmp.eq.s32.totalorder %s17, 3
      %p109 = por %p107, %p108
      %p110 = scmp.ne.s32.totalorder %s102, %s105
      %p111 = scmp.eq.s32.totalorder %s17, 0
      %p112 = por %p110, %p111
      %p113 = scmp.ne.s32.totalorder %s102, %s105
      %p114 = scmp.eq.s32.totalorder %s22, 3
      %p115 = por %p113, %p114
      %p116 = scmp.ne.s32.totalorder %s105, %s106
      %p117 = scmp.eq.s32.totalorder %s22, 0
      %p118 = por %p116, %p117
      %p119 = scmp.ne.s32.totalorder %s105, %s106
      %p120 = scmp.eq.s32.totalorder %s23, 3
      %p121 = por %p119, %p120
      %p123 = scmp.ne.s32.totalorder %s106, %s122
      %p124 = scmp.eq.s32.totalorder %s23, 0
      %p125 = por %p123, %p124
      %s126 = ssub.s32 %s25, %s39
      %p127 = scmp.eq.s32.totalorder %s126, 0
      %s129 = sadd.s32 %s128, 1
      %s130 = scalar_select %p127, %s128, %s129
      %p133 = pneg %p127
      %p134 = scmp.eq.s32.totalorder %s17, 3
      %p135 = por %p133, %p134
      %p136 = scmp.ne.s32.totalorder %s128, %s131
      %p137 = scmp.eq.s32.totalorder %s17, 0
      %p138 = por %p136, %p137
      %p139 = scmp.ne.s32.totalorder %s128, %s131
      %p140 = scmp.eq.s32.totalorder %s22, 3
      %p141 = por %p139, %p140
      %p142 = scmp.ne.s32.totalorder %s131, %s132
      %p143 = scmp.eq.s32.totalorder %s22, 0
      %p144 = por %p142, %p143
      %p145 = scmp.ne.s32.totalorder %s131, %s132
      %p146 = scmp.eq.s32.totalorder %s23, 3
      %p147 = por %p145, %p146
      %p149 = scmp.ne.s32.totalorder %s132, %s148
      %p150 = scmp.eq.s32.totalorder %s23, 0
      %p151 = por %p149, %p150
      %s152 = ssub.s32 %s24, %s43
      %s153 = ssub.s32 %s25, %s39
      %s154 = sor.u32 %s152, %s153
      %p155 = scmp.eq.s32.totalorder %s154, 0
      %s157 = sadd.s32 %s156, 1
      %s158 = scalar_select %p155, %s156, %s157
      %p161 = pneg %p155
      %p162 = scmp.eq.s32.totalorder %s17, 3
      %p163 = por %p161, %p162
      %p164 = scmp.ne.s32.totalorder %s156, %s159
      %p165 = scmp.eq.s32.totalorder %s17, 0
      %p166 = por %p164, %p165
      %p167 = scmp.ne.s32.totalorder %s156, %s159
      %p168 = scmp.eq.s32.totalorder %s22, 3
      %p169 = por %p167, %p168
      %p170 = scmp.ne.s32.totalorder %s159, %s160
      %p171 = scmp.eq.s32.totalorder %s22, 0
      %p172 = por %p170, %p171
      %p173 = scmp.ne.s32.totalorder %s159, %s160
      %p174 = scmp.eq.s32.totalorder %s23, 3
      %p175 = por %p173, %p174
      %p177 = scmp.ne.s32.totalorder %s160, %s176
      %p178 = scmp.eq.s32.totalorder %s23, 0
      %p179 = por %p177, %p178
      %p180 = scmp.le.s32.totalorder 1, %s17
      %p181 = scmp.lt.s32.totalorder %s17, 5
      %p182 = pnand %p180, %p181
      %p183 = pneg %p182
      // Predicated region
      $region9: #{tpu_custom_call.1} parent=5 // pred_check
        _
      $region10: #{tpu_custom_call.1} parent=5 // pred_check_branch
        %185 = sbr.rel (%p182) target = $region12
      $region11: #{tpu_custom_call.1} parent=5 // pred_region
        %s186 = ssub.s32 %s17, 1
        // Predicated region
        $region13: #{tpu_custom_call.1} parent=11 // pred_check
          %p187 = pneg %p92
        $region14: #{tpu_custom_call.1} parent=11 // pred_check_branch
          %189 = sbr.rel (%p187) target = $region16
        $region15: #{tpu_custom_call.1} parent=11 // pred_region
          %s190 = smul.u32 32, %s29
          %192 = vsyncadd [#allocation7], 0
          %s193 = sadd.s32 %s28, %s190
          %s194 = smul.addr %s193, 4
          %s195 = scalar_lea.hbm %s1, %s194
          %s196 = sshll.u32 %s195, 4
          %s197 = int_to_ptr.hbm [resolvable:$true] %s196
          %s198 = sshll.u32 [#allocation6], 4
          %s199 = int_to_ptr.vmem [resolvable:$true] %s198
          %204 = dma.hbm_to_vmem [thread:$0]  %s197, 2048, %s199, [#allocation7], 64, 64, 4
        $region16: #{tpu_custom_call.1} parent=11 // pred_fallthru
          _
        // Predicated region
        $region17: #{tpu_custom_call.1} parent=11 // pred_check
          %p205 = pneg %p118
        $region18: #{tpu_custom_call.1} parent=11 // pred_check_branch
          %207 = sbr.rel (%p205) target = $region20
        $region19: #{tpu_custom_call.1} parent=11 // pred_region
          %p208 = scmp.lt.s32.totalorder %s28, 0
          %s209 = scalar_select %p208, %s28, 0
          %s210 = scalar_lea.vmem %s2, %s209
        $region20: #{tpu_custom_call.1} parent=11 // pred_fallthru
          _
        // Predicated region
        $region21: #{tpu_custom_call.1} parent=11 // pred_check
          %p211 = pneg %p144
        $region22: #{tpu_custom_call.1} parent=11 // pred_check_branch
          %213 = sbr.rel (%p211) target = $region24
        $region23: #{tpu_custom_call.1} parent=11 // pred_region
          %p214 = scmp.lt.s32.totalorder %s28, 0
          %s215 = scalar_select %p214, %s28, 0
          %s216 = scalar_lea.vmem %s3, %s215
        $region24: #{tpu_custom_call.1} parent=11 // pred_fallthru
          _
      $region12: #{tpu_custom_call.1} parent=5 // pred_fallthru
        _
      %p217 = scmp.lt.s32.totalorder %s17, 4
      // Predicated region
      $region25: #{tpu_custom_call.1} parent=5 // pred_check
        %p218 = pneg %p217
      $region26: #{tpu_custom_call.1} parent=5 // pred_check_branch
        %220 = sbr.rel (%p218) target = $region28
      $region27: #{tpu_custom_call.1} parent=5 // pred_region
        // Predicated region
        $region29: #{tpu_custom_call.1} parent=27 // pred_check
          %p221 = pneg %p58
        $region30: #{tpu_custom_call.1} parent=27 // pred_check_branch
          %223 = sbr.rel (%p221) target = $region32
        $region31: #{tpu_custom_call.1} parent=27 // pred_region
          %s224 = sand.u32 %s48, 1
          %s225 = scalar_lea.sflag [#allocation4], %s224
          %s226 = sand.u32 %s48, 1
          %s227 = smul.addr %s226, 128
          %s228 = scalar_lea.vmem [#allocation3], %s227
          %s229 = smul.u32 16, %s24
          %s230 = smul.u32 2, %s26
          %232 = vsyncadd %s225, 0
          %s233 = smul.addr %s229, 2
          %s234 = sadd.s32 %s230, %s233
          %s235 = smul.addr %s234, 4
          %s236 = scalar_lea.hbm %s0, %s235
          %s237 = sshll.u32 %s236, 4
          %s238 = int_to_ptr.hbm [resolvable:$true] %s237
          %s239 = sshll.u32 %s228, 4
          %s240 = int_to_ptr.vmem [resolvable:$true] %s239
          %245 = dma.hbm_to_vmem [thread:$0]  %s238, 2048, %s240, %s225, 128, 128, 8
        $region32: #{tpu_custom_call.1} parent=27 // pred_fallthru
          _
      $region28: #{tpu_custom_call.1} parent=5 // pred_fallthru
        _
      %p246 = scmp.le.s32.totalorder 1, %s17
      %p247 = scmp.lt.s32.totalorder %s17, 5
      %p248 = pnand %p246, %p247
      %p249 = pneg %p248
      // Predicated region
      $region33: #{tpu_custom_call.1} parent=5 // pred_check
        _
      $region34: #{tpu_custom_call.1} parent=5 // pred_check_branch
        %251 = sbr.rel (%p248) target = $region36
      $region35: #{tpu_custom_call.1} parent=5 // pred_region
        %s252 = ssub.s32 %s17, 1
        %s253 = sand.u32 %s51, 1
        %s254 = scalar_lea.sflag [#allocation4], %s253
        %s255 = sand.u32 %s51, 1
        %s256 = smul.addr %s255, 128
        %s257 = scalar_lea.vmem [#allocation3], %s256
        // Predicated region
        $region37: #{tpu_custom_call.1} parent=35 // pred_check
          %p258 = pneg %p64
        $region38: #{tpu_custom_call.1} parent=35 // pred_check_branch
          %260 = sbr.rel (%p258) target = $region40
        $region39: #{tpu_custom_call.1} parent=35 // pred_region
          %262 = dma.done %s254, 2048
        $region40: #{tpu_custom_call.1} parent=35 // pred_fallthru
          _
        // Predicated region
        $region41: #{tpu_custom_call.1} parent=35 // pred_check
          %p263 = pneg %p92
        $region42: #{tpu_custom_call.1} parent=35 // pred_check_branch
          %265 = sbr.rel (%p263) target = $region44
        $region43: #{tpu_custom_call.1} parent=35 // pred_region
          %267 = dma.done [#allocation7], 2048
        $region44: #{tpu_custom_call.1} parent=35 // pred_fallthru
          _
        %s268 = sand.u32 %s51, 1
        %s269 = scalar_lea.sflag [#allocation4], %s268
        %s270 = sand.u32 %s51, 1
        %s271 = smul.addr %s270, 128
        %s272 = scalar_lea.vmem [#allocation3], %s271
        %p273 = pneg %p64
        %p274 = pneg %p61
        %p275 = pneg %p92
        %p276 = pneg %p89
        %p277 = scmp.lt.s32.totalorder %s28, 0
        %s278 = scalar_select %p277, %s28, 0
        %s279 = scalar_lea.vmem %s2, %s278
        %p280 = pneg %p118
        %p281 = pneg %p115
        %p282 = scmp.lt.s32.totalorder %s28, 0
        %s283 = scalar_select %p282, %s28, 0
        %s284 = scalar_lea.vmem %s3, %s283
        %p285 = pneg %p144
        %p286 = pneg %p141
        %p287 = pneg %p172
        %p288 = pneg %p169
        %s289 = sand.u32 %s159, 1
        %s290 = scalar_lea.sflag [#allocation5], %s289
        %s291 = sand.u32 %s159, 1
        %s292 = smul.addr %s291, 64
        %s293 = scalar_lea.vmem [#allocation8], %s292
        %s294 = smul.u32 16, %s27
        %s295 = smul.u32 2, %s29
        %s296 = smul.u32 32, %s29
        %p297 = scmp.lt.s32.totalorder %s28, 0
        %s298 = scalar_select %p297, %s28, 0
        %s299 = scalar_lea.vmem %s2, %s298
        %p300 = scmp.lt.s32.totalorder %s28, 0
        %s301 = scalar_select %p300, %s28, 0
        %s302 = scalar_lea.vmem %s3, %s301
        %s303 = smul.u32 16, %s27
        %p304 = scmp.eq.s32.totalorder %s29, 0
        // Predicated region
        $region45: #{tpu_custom_call.1} parent=35 // pred_check
          %p305 = pneg %p304
        $region46: #{tpu_custom_call.1} parent=35 // pred_check_branch
          %307 = sbr.rel (%p305) target = $region48
        $region47: #{tpu_custom_call.1} parent=35 // pred_region
          %308 = vst [vmem:[#allocation2] sm:$0xff] 0.0
          %309 = vst [vmem:[#allocation2 + $0x8] sm:$0xff] 0.0
          %310 = vst [vmem:[#allocation2 + $0x10] sm:$0xff] 0.0
          %311 = vst [vmem:[#allocation2 + $0x18] sm:$0xff] 0.0
          %312 = vst [vmem:[#allocation2 + $0x20] sm:$0xff] 0.0
          %313 = vst [vmem:[#allocation2 + $0x28] sm:$0xff] 0.0
          %314 = vst [vmem:[#allocation2 + $0x30] sm:$0xff] 0.0
          %315 = vst [vmem:[#allocation2 + $0x38] sm:$0xff] 0.0
          %316 = vst [vmem:[#allocation2 + $0x40] sm:$0xff] 0.0
          %317 = vst [vmem:[#allocation2 + $0x48] sm:$0xff] 0.0
          %318 = vst [vmem:[#allocation2 + $0x50] sm:$0xff] 0.0
          %319 = vst [vmem:[#allocation2 + $0x58] sm:$0xff] 0.0
          %320 = vst [vmem:[#allocation2 + $0x60] sm:$0xff] 0.0
          %321 = vst [vmem:[#allocation2 + $0x68] sm:$0xff] 0.0
          %322 = vst [vmem:[#allocation2 + $0x70] sm:$0xff] 0.0
          %323 = vst [vmem:[#allocation2 + $0x78] sm:$0xff] 0.0
        $region48: #{tpu_custom_call.1} parent=35 // pred_fallthru
          _
        %v324 = vld [vmem:[#allocation2] sm:$0xff]
        %v325 = vld [vmem:[#allocation2 + $0x8] sm:$0xff]
        %v326 = vld [vmem:[#allocation2 + $0x10] sm:$0xff]
        %v327 = vld [vmem:[#allocation2 + $0x18] sm:$0xff]
        %v328 = vld [vmem:[#allocation2 + $0x20] sm:$0xff]
        %v329 = vld [vmem:[#allocation2 + $0x28] sm:$0xff]
        %v330 = vld [vmem:[#allocation2 + $0x30] sm:$0xff]
        %v331 = vld [vmem:[#allocation2 + $0x38] sm:$0xff]
        %v332 = vld [vmem:[#allocation2 + $0x40] sm:$0xff]
        %v333 = vld [vmem:[#allocation2 + $0x48] sm:$0xff]
        %v334 = vld [vmem:[#allocation2 + $0x50] sm:$0xff]
        %v335 = vld [vmem:[#allocation2 + $0x58] sm:$0xff]
        %v336 = vld [vmem:[#allocation2 + $0x60] sm:$0xff]
        %v337 = vld [vmem:[#allocation2 + $0x68] sm:$0xff]
        %v338 = vld [vmem:[#allocation2 + $0x70] sm:$0xff]
        %v339 = vld [vmem:[#allocation2 + $0x78] sm:$0xff]
        %v340 = vld [vmem:[%s257] sm:$0xff]
        %v341 = vld [vmem:[%s257 + $0x8] sm:$0xff]
        %v342 = vld [vmem:[%s257 + $0x10] sm:$0xff]
        %v343 = vld [vmem:[%s257 + $0x18] sm:$0xff]
        %v344 = vld [vmem:[%s257 + $0x20] sm:$0xff]
        %v345 = vld [vmem:[%s257 + $0x28] sm:$0xff]
        %v346 = vld [vmem:[%s257 + $0x30] sm:$0xff]
        %v347 = vld [vmem:[%s257 + $0x38] sm:$0xff]
        %v348 = vld [vmem:[%s257 + $0x40] sm:$0xff]
        %v349 = vld [vmem:[%s257 + $0x48] sm:$0xff]
        %v350 = vld [vmem:[%s257 + $0x50] sm:$0xff]
        %v351 = vld [vmem:[%s257 + $0x58] sm:$0xff]
        %v352 = vld [vmem:[%s257 + $0x60] sm:$0xff]
        %v353 = vld [vmem:[%s257 + $0x68] sm:$0xff]
        %v354 = vld [vmem:[%s257 + $0x70] sm:$0xff]
        %v355 = vld [vmem:[%s257 + $0x78] sm:$0xff]
        %v356 = vld [vmem:[#allocation6] sm:$0xf]
        %v357 = vld [vmem:[#allocation6 + $0x4] sm:$0xf]
        %v358 = vld [vmem:[#allocation6 + $0x8] sm:$0xf]
        %v359 = vld [vmem:[#allocation6 + $0xc] sm:$0xf]
        %v360 = vld [vmem:[#allocation6 + $0x10] sm:$0xf]
        %v361 = vld [vmem:[#allocation6 + $0x14] sm:$0xf]
        %v362 = vld [vmem:[#allocation6 + $0x18] sm:$0xf]
        %v363 = vld [vmem:[#allocation6 + $0x1c] sm:$0xf]
        %v364 = vld [vmem:[#allocation6 + $0x20] sm:$0xf]
        %v365 = vld [vmem:[#allocation6 + $0x24] sm:$0xf]
        %v366 = vld [vmem:[#allocation6 + $0x28] sm:$0xf]
        %v367 = vld [vmem:[#allocation6 + $0x2c] sm:$0xf]
        %v368 = vld [vmem:[#allocation6 + $0x30] sm:$0xf]
        %v369 = vld [vmem:[#allocation6 + $0x34] sm:$0xf]
        %v370 = vld [vmem:[#allocation6 + $0x38] sm:$0xf]
        %v371 = vld [vmem:[#allocation6 + $0x3c] sm:$0xf]
        %v372 = vld [vmem:[#allocation6 + $0x40] sm:$0xf]
        %v373 = vld [vmem:[#allocation6 + $0x44] sm:$0xf]
        %v374 = vld [vmem:[#allocation6 + $0x48] sm:$0xf]
        %v375 = vld [vmem:[#allocation6 + $0x4c] sm:$0xf]
        %v376 = vld [vmem:[#allocation6 + $0x50] sm:$0xf]
        %v377 = vld [vmem:[#allocation6 + $0x54] sm:$0xf]
        %v378 = vld [vmem:[#allocation6 + $0x58] sm:$0xf]
        %v379 = vld [vmem:[#allocation6 + $0x5c] sm:$0xf]
        %v380 = vld [vmem:[#allocation6 + $0x60] sm:$0xf]
        %v381 = vld [vmem:[#allocation6 + $0x64] sm:$0xf]
        %v382 = vld [vmem:[#allocation6 + $0x68] sm:$0xf]
        %v383 = vld [vmem:[#allocation6 + $0x6c] sm:$0xf]
        %v384 = vld [vmem:[#allocation6 + $0x70] sm:$0xf]
        %v385 = vld [vmem:[#allocation6 + $0x74] sm:$0xf]
        %v386 = vld [vmem:[#allocation6 + $0x78] sm:$0xf]
        %v387 = vld [vmem:[#allocation6 + $0x7c] sm:$0xf]
        %v404 = vunpack.c.l.b16 %v340
        %v405 = vunpack.c.h.b16 %v340
        %v406 = vunpack.c.l.b16 %v341
        %v407 = vunpack.c.h.b16 %v341
        %v408 = vunpack.c.l.b16 %v342
        %v409 = vunpack.c.h.b16 %v342
        %v410 = vunpack.c.l.b16 %v343
        %v411 = vunpack.c.h.b16 %v343
        %v412 = vunpack.c.l.b16 %v344
        %v413 = vunpack.c.h.b16 %v344
        %v414 = vunpack.c.l.b16 %v345
        %v415 = vunpack.c.h.b16 %v345
        %v416 = vunpack.c.l.b16 %v346
        %v417 = vunpack.c.h.b16 %v346
        %v418 = vunpack.c.l.b16 %v347
        %v419 = vunpack.c.h.b16 %v347
        %v420 = vunpack.c.l.b16 %v348
        %v421 = vunpack.c.h.b16 %v348
        %v422 = vunpack.c.l.b16 %v349
        %v423 = vunpack.c.h.b16 %v349
        %v424 = vunpack.c.l.b16 %v350
        %v425 = vunpack.c.h.b16 %v350
        %v426 = vunpack.c.l.b16 %v351
        %v427 = vunpack.c.h.b16 %v351
        %v428 = vunpack.c.l.b16 %v352
        %v429 = vunpack.c.h.b16 %v352
        %v430 = vunpack.c.l.b16 %v353
        %v431 = vunpack.c.h.b16 %v353
        %v432 = vunpack.c.l.b16 %v354
        %v433 = vunpack.c.h.b16 %v354
        %v434 = vunpack.c.l.b16 %v355
        %v435 = vunpack.c.h.b16 %v355
        %v436 = vpack.c.b16 %v406, %v404
        %v437 = vpack.c.b16 %v407, %v405
        %v438 = vpack.c.b16 %v410, %v408
        %v439 = vpack.c.b16 %v411, %v409
        %v440 = vpack.c.b16 %v414, %v412
        %v441 = vpack.c.b16 %v415, %v413
        %v442 = vpack.c.b16 %v418, %v416
        %v443 = vpack.c.b16 %v419, %v417
        %v444 = vpack.c.b16 %v422, %v420
        %v445 = vpack.c.b16 %v423, %v421
        %v446 = vpack.c.b16 %v426, %v424
        %v447 = vpack.c.b16 %v427, %v425
        %v448 = vpack.c.b16 %v430, %v428
        %v449 = vpack.c.b16 %v431, %v429
        %v450 = vpack.c.b16 %v434, %v432
        %v451 = vpack.c.b16 %v435, %v433
        %v500 = vunpack.c.l.b16 %v356
        %v501 = vunpack.c.l.b16 %v357
        %v502 = vunpack.c.l.b16 %v358
        %v503 = vunpack.c.l.b16 %v359
        %v504 = vunpack.c.l.b16 %v360
        %v505 = vunpack.c.l.b16 %v361
        %v506 = vunpack.c.l.b16 %v362
        %v507 = vunpack.c.l.b16 %v363
        %v508 = vunpack.c.l.b16 %v364
        %v509 = vunpack.c.l.b16 %v365
        %v510 = vunpack.c.l.b16 %v366
        %v511 = vunpack.c.l.b16 %v367
        %v512 = vunpack.c.l.b16 %v368
        %v513 = vunpack.c.l.b16 %v369
        %v514 = vunpack.c.l.b16 %v370
        %v515 = vunpack.c.l.b16 %v371
        %v516 = vunpack.c.l.b16 %v372
        %v517 = vunpack.c.l.b16 %v373
        %v518 = vunpack.c.l.b16 %v374
        %v519 = vunpack.c.l.b16 %v375
        %v520 = vunpack.c.l.b16 %v376
        %v521 = vunpack.c.l.b16 %v377
        %v522 = vunpack.c.l.b16 %v378
        %v523 = vunpack.c.l.b16 %v379
        %v524 = vunpack.c.l.b16 %v380
        %v525 = vunpack.c.l.b16 %v381
        %v526 = vunpack.c.l.b16 %v382
        %v527 = vunpack.c.l.b16 %v383
        %v528 = vunpack.c.l.b16 %v384
        %v529 = vunpack.c.l.b16 %v385
        %v530 = vunpack.c.l.b16 %v386
        %v531 = vunpack.c.l.b16 %v387
        %v532 = vpack.c.b16 %v501, %v500
        %v533 = vpack.c.b16 %v503, %v502
        %v534 = vpack.c.b16 %v505, %v504
        %v535 = vpack.c.b16 %v507, %v506
        %v536 = vpack.c.b16 %v509, %v508
        %v537 = vpack.c.b16 %v511, %v510
        %v538 = vpack.c.b16 %v513, %v512
        %v539 = vpack.c.b16 %v515, %v514
        %v540 = vpack.c.b16 %v517, %v516
        %v541 = vpack.c.b16 %v519, %v518
        %v542 = vpack.c.b16 %v521, %v520
        %v543 = vpack.c.b16 %v523, %v522
        %v544 = vpack.c.b16 %v525, %v524
        %v545 = vpack.c.b16 %v527, %v526
        %v546 = vpack.c.b16 %v529, %v528
        %v547 = vpack.c.b16 %v531, %v530
        %564 = vmatpush.bf16.msra.mxu0 %v539
        %565 = vmatpush.bf16.msra.mxu0 %v538
        %566 = vmatpush.bf16.msra.mxu0 %v537
        %567 = vmatpush.bf16.msra.mxu0 %v536
        %568 = vmatpush.bf16.msra.mxu0 %v535
        %569 = vmatpush.bf16.msra.mxu0 %v534
        %570 = vmatpush.bf16.msra.mxu0 %v533
        %571 = vmatpush.bf16.msra.mxu0 %v532
        %572 = vmatmul.bf16.gmra.mxu0 %v436
        %v573 = vpop.f32.mrf.mxu0
        %v574 = vadd.f32 0.0, %v573
        %v575 = vpop.f32.mrf.mxu0
        %v576 = vadd.f32 0.0, %v575
        %577 = vmatmul.bf16.gmra.mxu0 %v438
        %v578 = vpop.f32.mrf.mxu0
        %v579 = vadd.f32 0.0, %v578
        %v580 = vpop.f32.mrf.mxu0
        %v581 = vadd.f32 0.0, %v580
        %582 = vmatmul.bf16.gmra.mxu0 %v440
        %v583 = vpop.f32.mrf.mxu0
        %v584 = vadd.f32 0.0, %v583
        %v585 = vpop.f32.mrf.mxu0
        %v586 = vadd.f32 0.0, %v585
        %587 = vmatmul.bf16.gmra.mxu0 %v442
        %v588 = vpop.f32.mrf.mxu0
        %v589 = vadd.f32 0.0, %v588
        %v590 = vpop.f32.mrf.mxu0
        %v591 = vadd.f32 0.0, %v590
        %592 = vmatmul.bf16.gmra.mxu0 %v444
        %v593 = vpop.f32.mrf.mxu0
        %v594 = vadd.f32 0.0, %v593
        %v595 = vpop.f32.mrf.mxu0
        %v596 = vadd.f32 0.0, %v595
        %597 = vmatmul.bf16.gmra.mxu0 %v446
        %v598 = vpop.f32.mrf.mxu0
        %v599 = vadd.f32 0.0, %v598
        %v600 = vpop.f32.mrf.mxu0
        %v601 = vadd.f32 0.0, %v600
        %602 = vmatmul.bf16.gmra.mxu0 %v448
        %v603 = vpop.f32.mrf.mxu0
        %v604 = vadd.f32 0.0, %v603
        %v605 = vpop.f32.mrf.mxu0
        %v606 = vadd.f32 0.0, %v605
        %607 = vmatmul.bf16.gmra.mxu0 %v450
        %v608 = vpop.f32.mrf.mxu0
        %v609 = vadd.f32 0.0, %v608
        %v610 = vpop.f32.mrf.mxu0
        %v611 = vadd.f32 0.0, %v610
        %612 = vdwg.mxu0
        %613 = vmatpush.bf16.msra.mxu0 %v547
        %614 = vmatpush.bf16.msra.mxu0 %v546
        %615 = vmatpush.bf16.msra.mxu0 %v545
        %616 = vmatpush.bf16.msra.mxu0 %v544
        %617 = vmatpush.bf16.msra.mxu0 %v543
        %618 = vmatpush.bf16.msra.mxu0 %v542
        %619 = vmatpush.bf16.msra.mxu0 %v541
        %620 = vmatpush.bf16.msra.mxu0 %v540
        %621 = vmatmul.bf16.gmra.mxu0 %v437
        %v622 = vpop.f32.mrf.mxu0
        %v623 = vadd.f32 %v574, %v622
        %v624 = vpop.f32.mrf.mxu0
        %v625 = vadd.f32 %v576, %v624
        %626 = vmatmul.bf16.gmra.mxu0 %v439
        %v627 = vpop.f32.mrf.mxu0
        %v628 = vadd.f32 %v579, %v627
        %v629 = vpop.f32.mrf.mxu0
        %v630 = vadd.f32 %v581, %v629
        %631 = vmatmul.bf16.gmra.mxu0 %v441
        %v632 = vpop.f32.mrf.mxu0
        %v633 = vadd.f32 %v584, %v632
        %v634 = vpop.f32.mrf.mxu0
        %v635 = vadd.f32 %v586, %v634
        %636 = vmatmul.bf16.gmra.mxu0 %v443
        %v637 = vpop.f32.mrf.mxu0
        %v638 = vadd.f32 %v589, %v637
        %v639 = vpop.f32.mrf.mxu0
        %v640 = vadd.f32 %v591, %v639
        %641 = vmatmul.bf16.gmra.mxu0 %v445
        %v642 = vpop.f32.mrf.mxu0
        %v643 = vadd.f32 %v594, %v642
        %v644 = vpop.f32.mrf.mxu0
        %v645 = vadd.f32 %v596, %v644
        %646 = vmatmul.bf16.gmra.mxu0 %v447
        %v647 = vpop.f32.mrf.mxu0
        %v648 = vadd.f32 %v599, %v647
        %v649 = vpop.f32.mrf.mxu0
        %v650 = vadd.f32 %v601, %v649
        %651 = vmatmul.bf16.gmra.mxu0 %v449
        %v652 = vpop.f32.mrf.mxu0
        %v653 = vadd.f32 %v604, %v652
        %v654 = vpop.f32.mrf.mxu0
        %v655 = vadd.f32 %v606, %v654
        %656 = vmatmul.bf16.gmra.mxu0 %v451
        %v657 = vpop.f32.mrf.mxu0
        %v658 = vadd.f32 %v609, %v657
        %v659 = vpop.f32.mrf.mxu0
        %v660 = vadd.f32 %v611, %v659
        %661 = vdwg.mxu0
        %v662 = vadd.f32 %v324, %v623
        %v663 = vadd.f32 %v325, %v625
        %v664 = vadd.f32 %v326, %v628
        %v665 = vadd.f32 %v327, %v630
        %v666 = vadd.f32 %v328, %v633
        %v667 = vadd.f32 %v329, %v635
        %v668 = vadd.f32 %v330, %v638
        %v669 = vadd.f32 %v331, %v640
        %v670 = vadd.f32 %v332, %v643
        %v671 = vadd.f32 %v333, %v645
        %v672 = vadd.f32 %v334, %v648
        %v673 = vadd.f32 %v335, %v650
        %v674 = vadd.f32 %v336, %v653
        %v675 = vadd.f32 %v337, %v655
        %v676 = vadd.f32 %v338, %v658
        %v677 = vadd.f32 %v339, %v660
        %678 = vst [vmem:[#allocation2] sm:$0xff] %v662
        %679 = vst [vmem:[#allocation2 + $0x8] sm:$0xff] %v663
        %680 = vst [vmem:[#allocation2 + $0x10] sm:$0xff] %v664
        %681 = vst [vmem:[#allocation2 + $0x18] sm:$0xff] %v665
        %682 = vst [vmem:[#allocation2 + $0x20] sm:$0xff] %v666
        %683 = vst [vmem:[#allocation2 + $0x28] sm:$0xff] %v667
        %684 = vst [vmem:[#allocation2 + $0x30] sm:$0xff] %v668
        %685 = vst [vmem:[#allocation2 + $0x38] sm:$0xff] %v669
        %686 = vst [vmem:[#allocation2 + $0x40] sm:$0xff] %v670
        %687 = vst [vmem:[#allocation2 + $0x48] sm:$0xff] %v671
        %688 = vst [vmem:[#allocation2 + $0x50] sm:$0xff] %v672
        %689 = vst [vmem:[#allocation2 + $0x58] sm:$0xff] %v673
        %690 = vst [vmem:[#allocation2 + $0x60] sm:$0xff] %v674
        %691 = vst [vmem:[#allocation2 + $0x68] sm:$0xff] %v675
        %692 = vst [vmem:[#allocation2 + $0x70] sm:$0xff] %v676
        %693 = vst [vmem:[#allocation2 + $0x78] sm:$0xff] %v677
        // Predicated region
        $region49: #{tpu_custom_call.1} parent=35 // pred_check
          %p694 = pneg %p304
        $region50: #{tpu_custom_call.1} parent=35 // pred_check_branch
          %696 = sbr.rel (%p694) target = $region52
        $region51: #{tpu_custom_call.1} parent=35 // pred_region
          %v697 = vld [vmem:[#allocation2] sm:$0xff]
          %v698 = vld [vmem:[#allocation2 + $0x8] sm:$0xff]
          %v699 = vld [vmem:[#allocation2 + $0x10] sm:$0xff]
          %v700 = vld [vmem:[#allocation2 + $0x18] sm:$0xff]
          %v701 = vld [vmem:[#allocation2 + $0x20] sm:$0xff]
          %v702 = vld [vmem:[#allocation2 + $0x28] sm:$0xff]
          %v703 = vld [vmem:[#allocation2 + $0x30] sm:$0xff]
          %v704 = vld [vmem:[#allocation2 + $0x38] sm:$0xff]
          %v705 = vld [vmem:[#allocation2 + $0x40] sm:$0xff]
          %v706 = vld [vmem:[#allocation2 + $0x48] sm:$0xff]
          %v707 = vld [vmem:[#allocation2 + $0x50] sm:$0xff]
          %v708 = vld [vmem:[#allocation2 + $0x58] sm:$0xff]
          %v709 = vld [vmem:[#allocation2 + $0x60] sm:$0xff]
          %v710 = vld [vmem:[#allocation2 + $0x68] sm:$0xff]
          %v711 = vld [vmem:[#allocation2 + $0x70] sm:$0xff]
          %v712 = vld [vmem:[#allocation2 + $0x78] sm:$0xff]
          %v713 = vld [vmem:[%s299] sm:$0x1]
          %v715 = vperm.slane %v713, 0
          %v717 = vmul.f32 %v697, %v715
          %v718 = vmul.f32 %v698, %v715
          %v719 = vmul.f32 %v699, %v715
          %v720 = vmul.f32 %v700, %v715
          %v721 = vmul.f32 %v701, %v715
          %v722 = vmul.f32 %v702, %v715
          %v723 = vmul.f32 %v703, %v715
          %v724 = vmul.f32 %v704, %v715
          %v725 = vmul.f32 %v705, %v715
          %v726 = vmul.f32 %v706, %v715
          %v727 = vmul.f32 %v707, %v715
          %v728 = vmul.f32 %v708, %v715
          %v729 = vmul.f32 %v709, %v715
          %v730 = vmul.f32 %v710, %v715
          %v731 = vmul.f32 %v711, %v715
          %v732 = vmul.f32 %v712, %v715
          %v733 = vld [vmem:[%s302] sm:$0x1]
          %v735 = vperm.slane %v733, 0
          %v737 = vadd.f32 %v717, %v735
          %v738 = vadd.f32 %v718, %v735
          %v739 = vadd.f32 %v719, %v735
          %v740 = vadd.f32 %v720, %v735
          %v741 = vadd.f32 %v721, %v735
          %v742 = vadd.f32 %v722, %v735
          %v743 = vadd.f32 %v723, %v735
          %v744 = vadd.f32 %v724, %v735
          %v745 = vadd.f32 %v725, %v735
          %v746 = vadd.f32 %v726, %v735
          %v747 = vadd.f32 %v727, %v735
          %v748 = vadd.f32 %v728, %v735
          %v749 = vadd.f32 %v729, %v735
          %v750 = vadd.f32 %v730, %v735
          %v751 = vadd.f32 %v731, %v735
          %v752 = vadd.f32 %v732, %v735
          %v753 = vmax.f32 %v737, 0.0
          %v754 = vmax.f32 %v738, 0.0
          %v755 = vmax.f32 %v739, 0.0
          %v756 = vmax.f32 %v740, 0.0
          %v757 = vmax.f32 %v741, 0.0
          %v758 = vmax.f32 %v742, 0.0
          %v759 = vmax.f32 %v743, 0.0
          %v760 = vmax.f32 %v744, 0.0
          %v761 = vmax.f32 %v745, 0.0
          %v762 = vmax.f32 %v746, 0.0
          %v763 = vmax.f32 %v747, 0.0
          %v764 = vmax.f32 %v748, 0.0
          %v765 = vmax.f32 %v749, 0.0
          %v766 = vmax.f32 %v750, 0.0
          %v767 = vmax.f32 %v751, 0.0
          %v768 = vmax.f32 %v752, 0.0
          %v769 = vpack.c.bf16 %v753, %v753
          %v770 = vpack.c.bf16 %v754, %v754
          %v771 = vpack.c.bf16 %v755, %v755
          %v772 = vpack.c.bf16 %v756, %v756
          %v773 = vpack.c.bf16 %v757, %v757
          %v774 = vpack.c.bf16 %v758, %v758
          %v775 = vpack.c.bf16 %v759, %v759
          %v776 = vpack.c.bf16 %v760, %v760
          %v777 = vpack.c.bf16 %v761, %v761
          %v778 = vpack.c.bf16 %v762, %v762
          %v779 = vpack.c.bf16 %v763, %v763
          %v780 = vpack.c.bf16 %v764, %v764
          %v781 = vpack.c.bf16 %v765, %v765
          %v782 = vpack.c.bf16 %v766, %v766
          %v783 = vpack.c.bf16 %v767, %v767
          %v784 = vpack.c.bf16 %v768, %v768
          %785 = vst [vmem:[%s293] sm:$0xf] %v769
          %786 = vst [vmem:[%s293 + $0x4] sm:$0xf] %v770
          %787 = vst [vmem:[%s293 + $0x8] sm:$0xf] %v771
          %788 = vst [vmem:[%s293 + $0xc] sm:$0xf] %v772
          %789 = vst [vmem:[%s293 + $0x10] sm:$0xf] %v773
          %790 = vst [vmem:[%s293 + $0x14] sm:$0xf] %v774
          %791 = vst [vmem:[%s293 + $0x18] sm:$0xf] %v775
          %792 = vst [vmem:[%s293 + $0x1c] sm:$0xf] %v776
          %793 = vst [vmem:[%s293 + $0x20] sm:$0xf] %v777
          %794 = vst [vmem:[%s293 + $0x24] sm:$0xf] %v778
          %795 = vst [vmem:[%s293 + $0x28] sm:$0xf] %v779
          %796 = vst [vmem:[%s293 + $0x2c] sm:$0xf] %v780
          %797 = vst [vmem:[%s293 + $0x30] sm:$0xf] %v781
          %798 = vst [vmem:[%s293 + $0x34] sm:$0xf] %v782
          %799 = vst [vmem:[%s293 + $0x38] sm:$0xf] %v783
          %800 = vst [vmem:[%s293 + $0x3c] sm:$0xf] %v784
        $region52: #{tpu_custom_call.1} parent=35 // pred_fallthru
          _
        %s801 = sand.u32 %s159, 1
        %s802 = scalar_lea.sflag [#allocation5], %s801
        %s803 = sand.u32 %s159, 1
        %s804 = smul.addr %s803, 64
        %s805 = scalar_lea.vmem [#allocation8], %s804
        // Predicated region
        $region53: #{tpu_custom_call.1} parent=35 // pred_check
          %p806 = pneg %p169
        $region54: #{tpu_custom_call.1} parent=35 // pred_check_branch
          %808 = sbr.rel (%p806) target = $region56
        $region55: #{tpu_custom_call.1} parent=35 // pred_region
          %s809 = smul.u32 16, %s27
          %811 = vsyncadd %s802, 0
          %s812 = sadd.s32 %s28, %s809
          %s813 = smul.addr %s812, 4
          %s814 = scalar_lea.hbm %s4, %s813
          %s815 = sshll.u32 %s805, 4
          %s816 = int_to_ptr.vmem [resolvable:$true] %s815
          %s817 = sshll.u32 %s814, 4
          %s818 = int_to_ptr.hbm [resolvable:$true] %s817
          %823 = dma.vmem_to_hbm [thread:$0]  %s816, 1024, %s818, %s802, 64, 64, 4
        $region56: #{tpu_custom_call.1} parent=35 // pred_fallthru
          _
      $region36: #{tpu_custom_call.1} parent=5 // pred_fallthru
        _
      %p824 = scmp.le.s32.totalorder 2, %s17
      // Predicated region
      $region57: #{tpu_custom_call.1} parent=5 // pred_check
        %p825 = pneg %p824
      $region58: #{tpu_custom_call.1} parent=5 // pred_check_branch
        %827 = sbr.rel (%p825) target = $region60
      $region59: #{tpu_custom_call.1} parent=5 // pred_region
        %s828 = ssub.s32 %s17, 2
        // Predicated region
        $region61: #{tpu_custom_call.1} parent=59 // pred_check
          %p829 = pneg %p175
        $region62: #{tpu_custom_call.1} parent=59 // pred_check_branch
          %831 = sbr.rel (%p829) target = $region64
        $region63: #{tpu_custom_call.1} parent=59 // pred_region
          %s832 = sand.u32 %s160, 1
          %s833 = scalar_lea.sflag [#allocation5], %s832
          %s834 = sand.u32 %s160, 1
          %s835 = smul.addr %s834, 64
          %s836 = scalar_lea.vmem [#allocation8], %s835
          %838 = dma.done %s833, 1024
        $region64: #{tpu_custom_call.1} parent=59 // pred_fallthru
          _
      $region60: #{tpu_custom_call.1} parent=5 // pred_fallthru
        _
    $region6: #{tpu_custom_call.1} parent=1 // loop_footer
      %s21 = sadd.s32 1, %s17
    $region7: #{tpu_custom_call.1} parent=1 // loop_footer_branch
      %16 = sbr.rel target = $region3
    $region8: #{tpu_custom_call.1} parent=1 // loop_exit
      _
    %839 = vsyncpa [#allocation4], 1
    %s840 = scalar_lea.sflag [#allocation4], 1
    %841 = vsyncpa %s840, 1
    %842 = vsyncpa [#allocation7], 1
    %843 = vsyncpa [#allocation5], 1
    %s844 = scalar_lea.sflag [#allocation5], 1
    %845 = vsyncpa %s844, 1

</llo_original>
